<compile_context>
chip_gen: v7x
topology: tpu7x:2x2x1
jax: 0.10.0
libtpu: 0.0.40
codegen_flags: <defaults>
</compile_context>

<pallas_src>
import functools

import jax
import jax.numpy as jnp
from jax.experimental import pallas as pl
from jax.experimental.pallas import tpu as pltpu


def _round_up(x, m):
    return (x + m - 1) // m * m


def _emb_gather_kernel(*refs, tblk, emb_dim, aux_dim, zero_padding, has_aux,
                       drop_rate, training, seed):
    """One grid step = `tblk` tokens.

    refs (in order):
      ids_smem  : (n_tot,)          int32  SMEM  (scalar prefetch; gather indices)
      [ids_blk] : (tblk, 1)         int32  VMEM  (only if zero_padding; mask source)
      [aux_blk] : (tblk, aux_dim)   f32    VMEM  (only if has_aux)
      table_hbm : (V, D)            f32    HBM   (memory_space=pl.ANY, manual DMA gather)
      out_blk   : (tblk, D+aux_dim) f32    VMEM
      rows      : (tblk, D)         f32    VMEM scratch (gather landing buffer)
      sems      : (tblk,)           DMA semaphores
    """
    i = 0
    ids_smem = refs[i]; i += 1
    ids_blk = None
    if zero_padding:
        ids_blk = refs[i]; i += 1
    aux_blk = None
    if has_aux:
        aux_blk = refs[i]; i += 1
    table_hbm = refs[i]; i += 1
    out_blk = refs[i]; i += 1
    rows = refs[i]; i += 1
    sems = refs[i]; i += 1

    base = pl.program_id(0) * tblk

    # Issue one row-gather DMA per token; they all run concurrently on the DMA
    # engines, so the whole block's worth of HBM latency overlaps.
    @pl.loop(0, tblk)
    def _issue(t):
        row = ids_smem[base + t]
        pltpu.make_async_copy(
            table_hbm.at[pl.ds(row, 1), :],
            rows.at[pl.ds(t, 1), :],
            sems.at[t],
        ).start()

    # Wait for all of them before touching `rows`.
    @pl.loop(0, tblk)
    def _wait(t):
        pltpu.make_async_copy(
            table_hbm.at[pl.ds(0, 1), :],
            rows.at[pl.ds(t, 1), :],
            sems.at[t],
        ).wait()

    emb = rows[...]

    if zero_padding:
        # Emb_layer.set_zeros([0, 1, 2, 3]): ids < 4 map to a zero row.
        emb = jnp.where(ids_blk[...] >= 4, emb, 0.0)

    if training and drop_rate > 0.0:
        # nn.Dropout(p) in train mode: zero with prob p, scale survivors by 1/(1-p).
        # Integer-threshold compare on raw random bits (no float conversion).
        pltpu.prng_seed(seed + pl.program_id(0))
        bits = pltpu.prng_random_bits(emb.shape)
        if bits.dtype != jnp.uint32:
            bits = pltpu.bitcast(bits, jnp.uint32)
        threshold = min(int(round(drop_rate * 4294967296.0)), 4294967295)
        keep = bits >= jnp.uint32(threshold)
        emb = jnp.where(keep, emb * (1.0 / (1.0 - drop_rate)), 0.0)

    if has_aux:
        out_blk[:, 0:emb_dim] = emb.astype(out_blk.dtype)
        out_blk[:, emb_dim:emb_dim + aux_dim] = aux_blk[...].astype(out_blk.dtype)
    else:
        out_blk[...] = emb.astype(out_blk.dtype)


def emb_layer_forward(inputs, table, *, zero_padding=False, drop_rate=0.0,
                      training=False, seed=0, auxiliary_embs=None, tblk=256):
    """Pallas implementation of Emb_layer.forward.

    inputs: [B, S] int32 token ids.
    table:  [vocab, dim] float32 embedding weights.
    Returns [B, S, dim] (or [B, S, dim + aux_dim] if auxiliary_embs is given).
    """
    B, S = inputs.shape
    V, D = table.shape
    N = B * S
    has_aux = auxiliary_embs is not None
    aux_dim = int(auxiliary_embs.shape[-1]) if has_aux else 0
    d_out = D + aux_dim

    if training:
        assert drop_rate < 1.0, "drop_rate must be < 1.0 in training mode"

    # Clamp ids so the DMA gather can never read out of bounds.
    ids = jnp.clip(inputs.reshape(N).astype(jnp.int32), 0, V - 1)

    # Token block size: large enough to amortize per-grid-step overhead, but no
    # larger than the (8-aligned) number of tokens.
    blk = min(_round_up(max(tblk, 8), 8), _round_up(N, 8))
    n_tot = _round_up(N, blk)
    if n_tot > N:
        ids = jnp.pad(ids, (0, n_tot - N))

    operands = [ids]            # scalar-prefetch arg -> SMEM
    in_specs = []
    if zero_padding:
        operands.append(ids.reshape(n_tot, 1))
        in_specs.append(pl.BlockSpec((blk, 1), lambda i, ids_s: (i, 0)))
    if has_aux:
        aux = auxiliary_embs.reshape(N, aux_dim).astype(jnp.float32)
        if n_tot > N:
            aux = jnp.pad(aux, ((0, n_tot - N), (0, 0)))
        operands.append(aux)
        in_specs.append(pl.BlockSpec((blk, aux_dim), lambda i, ids_s: (i, 0)))
    operands.append(table.astype(jnp.float32))
    in_specs.append(pl.BlockSpec(memory_space=pl.ANY))   # table stays in HBM

    kernel = functools.partial(
        _emb_gather_kernel,
        tblk=blk, emb_dim=D, aux_dim=aux_dim,
        zero_padding=bool(zero_padding), has_aux=has_aux,
        drop_rate=float(drop_rate), training=bool(training), seed=int(seed),
    )

    out_flat = pl.pallas_call(
        kernel,
        out_shape=jax.ShapeDtypeStruct((n_tot, d_out), jnp.float32),
        grid_spec=pltpu.PrefetchScalarGridSpec(
            num_scalar_prefetch=1,
            grid=(n_tot // blk,),
            in_specs=in_specs,
            out_specs=pl.BlockSpec((blk, d_out), lambda i, ids_s: (i, 0)),
            scratch_shapes=[
                pltpu.VMEM((blk, D), jnp.float32),      # gathered rows
                pltpu.SemaphoreType.DMA((blk,)),        # one sem per in-flight row DMA
            ],
        ),
        compiler_params=pltpu.CompilerParams(
            dimension_semantics=("parallel",),
        ),
    )(*operands)

    # TODO(synk): when N is not a multiple of blk this slice costs one extra copy;
    # reshape is free otherwise.
    return out_flat[:N].reshape(B, S, d_out)


def make_embedding_table(key, size, dim):
    """Deterministic equivalent of Emb_layer.random_embedding: U(-sqrt(3/dim), sqrt(3/dim))."""
    scale = jnp.sqrt(3.0 / dim)
    return jax.random.uniform(key, (size, dim), jnp.float32, minval=-scale, maxval=scale)


if __name__ == "__main__":
    key = jax.random.PRNGKey(0)
    k_tab, k_ids, k_aux = jax.random.split(key, 3)

    vocab, dim = 64, 128
    B, S = 2, 8
    aux_dim = 64

    table = make_embedding_table(k_tab, vocab, dim)
    ids = jax.random.randint(k_ids, (B, S), 0, vocab, dtype=jnp.int32)
    # Make sure some padding ids (< 4) are present so zero_padding is exercised.
    ids = ids.at[0, 0].set(0).at[0, 1].set(2).at[1, 3].set(3)
    aux = jax.random.normal(k_aux, (B, S, aux_dim), jnp.float32)

    # Case 1: zero_padding + auxiliary concat, eval mode (dropout is identity).
    out = emb_layer_forward(ids, table, zero_padding=True, drop_rate=0.5,
                            training=False, auxiliary_embs=aux)
    out = jax.block_until_ready(out)
    table_zp = table.at[:4].set(0.0)
    ref = jnp.concatenate([table_zp[ids], aux], axis=-1)
    assert out.shape == (B, S, dim + aux_dim)
    assert jnp.allclose(out, ref, atol=1e-5), "mismatch vs reference (zero_padding + aux)"

    # Case 2: plain lookup, no aux, no zero_padding.
    out2 = emb_layer_forward(ids, table, zero_padding=False, drop_rate=0.0,
                             training=False)
    out2 = jax.block_until_ready(out2)
    assert out2.shape == (B, S, dim)
    assert jnp.allclose(out2, table[ids], atol=1e-5), "mismatch vs reference (plain)"

    print("KERNEL_OK")
</pallas_src>

<mosaic_0001>
module attributes {stable_mosaic.version = 11 : i64} {
  func.func @_emb_gather_kernel(%arg0: i32, %arg1: memref<16xi32, #tpu.memory_space<smem>>, %arg2: memref<16x1xi32, #tpu.memory_space<vmem>>, %arg3: memref<16x64xf32, #tpu.memory_space<vmem>>, %arg4: memref<64x128xf32, #tpu.memory_space<any>>, %arg5: memref<16x192xf32, #tpu.memory_space<vmem>>, %arg6: memref<16x128xf32, #tpu.memory_space<vmem>>, %arg7: memref<16x!tpu.dma_semaphore, #tpu.memory_space<semaphore_mem>>) attributes {dimension_semantics = [#tpu.dimension_semantics<parallel>], iteration_bounds = array<i64: 1>, scalar_prefetch = 1 : i64, scratch_operands = 2 : i64, tpu.core_type = #tpu.core_type<tc>, window_params = [{transform_indices = @transform_0, window_bounds = array<i64: 16, 1>}, {transform_indices = @transform_1, window_bounds = array<i64: 16, 64>}, {}, {transform_indices = @transform_3, window_bounds = array<i64: 16, 192>}]} {
    %c16_i32 = arith.constant 16 : i32
    %0 = arith.muli %arg0, %c16_i32 : i32
    %c0_i32 = arith.constant 0 : i32
    %c16_i32_0 = arith.constant 16 : i32
    %1 = arith.addi %c0_i32, %c16_i32_0 : i32
    %c1_i32 = arith.constant 1 : i32
    scf.for %arg8 = %c0_i32 to %1 step %c1_i32  : i32 {
      %c1_i32_14 = arith.constant 1 : i32
      %14 = arith.muli %arg8, %c1_i32_14 : i32
      %c0_i32_15 = arith.constant 0 : i32
      %15 = arith.addi %c0_i32_15, %14 : i32
      %16 = arith.addi %0, %15 : i32
      %17 = arith.index_cast %16 : i32 to index
      %18 = memref.load %arg1[%17] : memref<16xi32, #tpu.memory_space<smem>>
      %c0_i32_16 = arith.constant 0 : i32
      %19 = tpu.memref_slice %arg4[%18, %c0_i32_16] : memref<64x128xf32, #tpu.memory_space<any>> -> memref<1x128xf32, #tpu.memory_space<any>>
      %c0_i32_17 = arith.constant 0 : i32
      %20 = tpu.memref_slice %arg6[%15, %c0_i32_17] : memref<16x128xf32, #tpu.memory_space<vmem>> -> memref<1x128xf32, #tpu.memory_space<vmem>>
      %21 = tpu.memref_slice %arg7[%15] : memref<16x!tpu.dma_semaphore, #tpu.memory_space<semaphore_mem>> -> memref<1x!tpu.dma_semaphore, #tpu.memory_space<semaphore_mem>>
      %22 = tpu.memref_squeeze %21 : memref<1x!tpu.dma_semaphore, #tpu.memory_space<semaphore_mem>> -> memref<!tpu.dma_semaphore, #tpu.memory_space<semaphore_mem>>
      tpu.enqueue_dma source(%19 : memref<1x128xf32, #tpu.memory_space<any>>) target(%20 : memref<1x128xf32, #tpu.memory_space<vmem>>) target_semaphore(%22 : memref<!tpu.dma_semaphore, #tpu.memory_space<semaphore_mem>>)
    }
    %c16_i32_1 = arith.constant 16 : i32
    %c0_i32_2 = arith.constant 0 : i32
    %c16_i32_3 = arith.constant 16 : i32
    %2 = arith.addi %c0_i32_2, %c16_i32_3 : i32
    %c1_i32_4 = arith.constant 1 : i32
    scf.for %arg8 = %c0_i32_2 to %2 step %c1_i32_4  : i32 {
      %c1_i32_14 = arith.constant 1 : i32
      %14 = arith.muli %arg8, %c1_i32_14 : i32
      %c0_i32_15 = arith.constant 0 : i32
      %15 = arith.addi %c0_i32_15, %14 : i32
      %c0_i32_16 = arith.constant 0 : i32
      %c0_i32_17 = arith.constant 0 : i32
      %16 = tpu.memref_slice %arg4[%c0_i32_16, %c0_i32_17] : memref<64x128xf32, #tpu.memory_space<any>> -> memref<1x128xf32, #tpu.memory_space<any>>
      %c0_i32_18 = arith.constant 0 : i32
      %17 = tpu.memref_slice %arg6[%15, %c0_i32_18] : memref<16x128xf32, #tpu.memory_space<vmem>> -> memref<1x128xf32, #tpu.memory_space<vmem>>
      %18 = tpu.memref_slice %arg7[%15] : memref<16x!tpu.dma_semaphore, #tpu.memory_space<semaphore_mem>> -> memref<1x!tpu.dma_semaphore, #tpu.memory_space<semaphore_mem>>
      %19 = tpu.memref_squeeze %18 : memref<1x!tpu.dma_semaphore, #tpu.memory_space<semaphore_mem>> -> memref<!tpu.dma_semaphore, #tpu.memory_space<semaphore_mem>>
      tpu.wait_dma2 semaphore(%19 : memref<!tpu.dma_semaphore, #tpu.memory_space<semaphore_mem>>) src(%16 : memref<1x128xf32, #tpu.memory_space<any>>) dst(%17 : memref<1x128xf32, #tpu.memory_space<vmem>>)
    }
    %c16_i32_5 = arith.constant 16 : i32
    %c0 = arith.constant 0 : index
    %c0_6 = arith.constant 0 : index
    %3 = vector.load %arg6[%c0, %c0_6] : memref<16x128xf32, #tpu.memory_space<vmem>>, vector<16x128xf32>
    %c0_7 = arith.constant 0 : index
    %c0_8 = arith.constant 0 : index
    %4 = vector.load %arg2[%c0_7, %c0_8] : memref<16x1xi32, #tpu.memory_space<vmem>>, vector<16x1xi32>
    %c4_i32 = arith.constant 4 : i32
    %5 = vector.broadcast %c4_i32 : i32 to vector<16x1xi32>
    %6 = arith.cmpi sge, %4, %5 : vector<16x1xi32>
    %cst = arith.constant 0.000000e+00 : f32
    %7 = vector.shape_cast %6 : vector<16x1xi1> to vector<16x1xi1>
    %8 = vector.broadcast %7 : vector<16x1xi1> to vector<16x128xi1>
    %9 = vector.broadcast %cst : f32 to vector<16x128xf32>
    %10 = arith.select %8, %3, %9 : vector<16x128xi1>, vector<16x128xf32>
    %c0_9 = arith.constant 0 : index
    %c0_10 = arith.constant 0 : index
    %11 = vector.load %arg5[%c0_9, %c0_10] : memref<16x192xf32, #tpu.memory_space<vmem>>, vector<16x128xf32>
    tpu.vector_store %arg5[%c0_9, %c0_10], %10 {strides = array<i32>} : memref<16x192xf32, #tpu.memory_space<vmem>>, vector<16x128xf32>,
    %c0_11 = arith.constant 0 : index
    %c0_12 = arith.constant 0 : index
    %12 = vector.load %arg3[%c0_11, %c0_12] : memref<16x64xf32, #tpu.memory_space<vmem>>, vector<16x64xf32>
    %c0_13 = arith.constant 0 : index
    %c128 = arith.constant 128 : index
    %13 = vector.load %arg5[%c0_13, %c128] : memref<16x192xf32, #tpu.memory_space<vmem>>, vector<16x64xf32>
    tpu.vector_store %arg5[%c0_13, %c128], %12 {strides = array<i32>} : memref<16x192xf32, #tpu.memory_space<vmem>>, vector<16x64xf32>,
    return
  }
  func.func @transform_0(%arg0: i32, %arg1: memref<16xi32, #tpu.memory_space<smem>>) -> (i32, i32) {
    %c0_i32 = arith.constant 0 : i32
    %c0_i32_0 = arith.constant 0 : i32
    return %arg0, %c0_i32 : i32, i32
  }
  func.func @transform_1(%arg0: i32, %arg1: memref<16xi32, #tpu.memory_space<smem>>) -> (i32, i32) {
    %c0_i32 = arith.constant 0 : i32
    %c0_i32_0 = arith.constant 0 : i32
    return %arg0, %c0_i32 : i32, i32
  }
  func.func @transform_3(%arg0: i32, %arg1: memref<16xi32, #tpu.memory_space<smem>>) -> (i32, i32) {
    %c0_i32 = arith.constant 0 : i32
    %c0_i32_0 = arith.constant 0 : i32
    return %arg0, %c0_i32 : i32, i32
  }
}

</mosaic_0001>

<llo_original>
// kernel: tpu_custom_call.1
$region0: #{tpu_custom_call.1}
  #allocation0 [shape = 'u32[]', space=smem, size = 0x4, offset = 0x4, fixed_abs, tag = 'smem constant byte address 0x4 - core index']
  #allocation1 [shape = 'u32[144,128]{1,0:T(1,128)}', space=vmem, size = 0x12000, scoped, tag = 'internal scratch']
  #allocation2 [shape = 'f32[16,128]{1,0:T(8,128)}', space=vmem, size = 0x2000, scoped, tag = 'scratch operand']
  #allocation3 [shape = 's32[16]{0}', space=sflag, size = 0x40, scoped, tag = 'scratch operand']
  #allocation4 [shape = 's32[1]{0}', space=sflag, size = 0x4, scoped, tag = 'scoped memory for tpu_custom_call.1']
  #allocation5 [shape = 'u8[512]{0}', space=smem, size = 0x200, scoped, tag = 'prefetched SMEM operand 0']
  #allocation8 [shape = 's32[]', space=sflag, size = 0x4, offset = 0, fixed_abs, tag = 'sflag constant byte address 0x0 - dummy sync flag']
  #allocation9 [shape = 's32[]', space=sflag, size = 0x4, offset = 0, fixed_abs, tag = 'sflag constant byte address 0x0 - dummy sync flag']
  #allocation10 [shape = 'u32[]', space=smem, size = 0x4, offset = 0x44, fixed_abs, tag = 'smem constant byte address 0x44 - assertion arg 0']
  #allocation11 [shape = 'u32[]', space=smem, size = 0x4, offset = 0x48, fixed_abs, tag = 'smem constant byte address 0x48 - assertion arg 1']
  %s0 = inlined_call_operand.vmem [shape: s32[16], index: 0, kind: input, shape index: {}]
  %s1 = inlined_call_operand.vmem [shape: s32[16,1], index: 1, kind: input, shape index: {}]
  %s2 = inlined_call_operand.vmem [shape: f32[16,64], index: 2, kind: input, shape index: {}]
  %s3 = inlined_call_operand.hbm [shape: f32[64,128], index: 3, kind: input, shape index: {}]
  %s4 = inlined_call_operand.hbm [shape: f32[16,192], index: 4, kind: output, shape index: {}]
  %s5 = sld [smem:[#allocation0]]
  $region36: #{tpu_custom_call.1} parent=0
    _
  %s7 = ssub.s32 1, %s5
  %s8 = scalar_select 0, %s7, %s5
  %s9 = sshll.u32 %s0, 4
  %s10 = int_to_ptr.vmem [resolvable:$true] %s9
  %12 = dma.vmem_to_smem %s10, 16, [#allocation5], [#allocation4]
  %13 = dma.done [#allocation4], 16
  %14 = sfence
  $region1: #{tpu_custom_call.1} parent=0
    #allocation6 [shape = 'u8[16384]{0}', space=vmem, size = 0x4000, scoped, tag = 'output window, operand 0, single buffered']
    #allocation7 [shape = 's32[1]{0}', space=sflag, size = 0x4, scoped, tag = 'scoped memory for tpu_custom_call.1']
    %15 = vsyncpa [#allocation7], 0
    // Predicated region
    $region2: #{tpu_custom_call.1} parent=1 // pred_check
      _
    $region3: #{tpu_custom_call.1} parent=1 // pred_check_branch
      %17 = sbr.rel (0) target = $region5
    $region4: #{tpu_custom_call.1} parent=1 // pred_region
      _
    $region5: #{tpu_custom_call.1} parent=1 // pred_fallthru
      _
    // Predicated region
    $region6: #{tpu_custom_call.1} parent=1 // pred_check
      _
    $region7: #{tpu_custom_call.1} parent=1 // pred_check_branch
      %19 = sbr.rel (0) target = $region9
    $region8: #{tpu_custom_call.1} parent=1 // pred_region
      _
    $region9: #{tpu_custom_call.1} parent=1 // pred_fallthru
      _
    %s20 = smul.u32 0, 16
    loop: start=0, step=1, limit=16
    $region10: #{tpu_custom_call.1} parent=1 // loop_pre_header
      _
    $region11: #{tpu_custom_call.1} parent=1 // loop_header
      %s22 = sphi 0, %s26
      %p23 = scmp.ge.s32.totalorder %s22, 16
    $region12: #{tpu_custom_call.1} parent=1 // loop_header_branch
      %25 = sbr.rel (%p23) target = $region16
    $region13: #{tpu_custom_call.1} parent=1 // loop_body
      %s27 = sadd.s32 %s20, %s22
      %s28 = sld [smem:[#allocation5 + %s27]]
      %s29 = smul.addr %s28, 16
      %s30 = scalar_lea.hbm %s3, %s29
      %s31 = scalar_lea.vmem [#allocation2], %s22
      %s32 = scalar_lea.sflag [#allocation3], %s22
      // Predicated region
      $region17: #{tpu_custom_call.1} parent=13 // pred_check
        _
      $region18: #{tpu_custom_call.1} parent=13 // pred_check_branch
        %34 = sbr.rel target = $region20
      $region19: #{tpu_custom_call.1} parent=13 // pred_region
        %35 = sst [smem:[#allocation10]] [#allocation9]
        %36 = sst [smem:[#allocation11]] [#allocation8]
      $region20: #{tpu_custom_call.1} parent=13 // pred_fallthru
        _
      %38 = shalt.err (0)
      %s40 = sshll.u32 %s31, 4
      %s41 = int_to_ptr.vmem [resolvable:$true] %s40
      %43 = dma.hbm_to_vmem [thread:$0]  %s30, 16, %s41, %s32
    $region14: #{tpu_custom_call.1} parent=1 // loop_footer
      %s26 = sadd.s32 1, %s22
    $region15: #{tpu_custom_call.1} parent=1 // loop_footer_branch
      %21 = sbr.rel target = $region11
    $region16: #{tpu_custom_call.1} parent=1 // loop_exit
      _
    loop: start=0, step=1, limit=16
    $region21: #{tpu_custom_call.1} parent=1 // loop_pre_header
      _
    $region22: #{tpu_custom_call.1} parent=1 // loop_header
      %s45 = sphi 0, %s49
      %p46 = scmp.ge.s32.totalorder %s45, 16
    $region23: #{tpu_custom_call.1} parent=1 // loop_header_branch
      %48 = sbr.rel (%p46) target = $region27
    $region24: #{tpu_custom_call.1} parent=1 // loop_body
      %s50 = scalar_lea.sflag [#allocation3], %s45
      %s51 = smul.u32 1, 1
      %s52 = sshll.u32 %s51, 4
      %53 = dma.done %s50, %s52
    $region25: #{tpu_custom_call.1} parent=1 // loop_footer
      %s49 = sadd.s32 1, %s45
    $region26: #{tpu_custom_call.1} parent=1 // loop_footer_branch
      %44 = sbr.rel target = $region22
    $region27: #{tpu_custom_call.1} parent=1 // loop_exit
      _
    %v54 = vld [vmem:[#allocation2] sm:$0xff]
    %v55 = vld [vmem:[#allocation2 + $0x8] sm:$0xff]
    %v56 = vld [vmem:[%s1] sm:$0xff]
    %v57 = vld [vmem:[%s1 + $0x8] sm:$0xff]
    %vm58 = vcmp.ge.s32.totalorder %v56, 4
    %vm59 = vcmp.ge.s32.totalorder %v57, 4
    %v60 = vsel %vm58, 1, 0
    %v61 = vsel %vm59, 1, 0
    %62 = vset.pattern.permute.xlu0 0
    %63 = vperm.xlu0 %62, %v60
    %v64 = vpop.permute.xlu0 %63
    %65 = vset.pattern.permute.xlu0 0
    %66 = vperm.xlu0 %65, %v61
    %v67 = vpop.permute.xlu0 %66
    %vm68 = vcmp.eq.s32.totalorder %v64, 1
    %vm69 = vcmp.eq.s32.totalorder %v67, 1
    %v70 = vsel %vm68, %v54, 0.0
    %v71 = vsel %vm69, %v55, 0.0
    %72 = vst [vmem:[#allocation6] sm:$0xff] %v70
    %73 = vst [vmem:[#allocation6 + $0x10] sm:$0xff] %v71
    %v74 = vld [vmem:[%s2] sm:$0xff]
    %v75 = vld [vmem:[%s2 + $0x8] sm:$0xff]
    %vm76 = vcmask 523264
    %77 = vst.msk [vmem:[#allocation6 + $0x8] sm:$0xff] %vm76, %v74
    %78 = vst.msk [vmem:[#allocation6 + $0x18] sm:$0xff] %vm76, %v75
    // Predicated region
    $region28: #{tpu_custom_call.1} parent=1 // pred_check
      _
    $region29: #{tpu_custom_call.1} parent=1 // pred_check_branch
      %80 = sbr.rel (0) target = $region31
    $region30: #{tpu_custom_call.1} parent=1 // pred_region
      %s82 = ssub.s32 512, 512
      %83 = vsyncadd [#allocation7], %s82
      %s84 = sshll.u32 [#allocation6], 4
      %s85 = int_to_ptr.vmem [resolvable:$true] %s84
      %90 = dma.vmem_to_hbm [thread:$0]  %s85, 512, %s4, [#allocation7], 256, 256, 16
    $region31: #{tpu_custom_call.1} parent=1 // pred_fallthru
      _
    // Predicated region
    $region32: #{tpu_custom_call.1} parent=1 // pred_check
      _
    $region33: #{tpu_custom_call.1} parent=1 // pred_check_branch
      %92 = sbr.rel (0) target = $region35
    $region34: #{tpu_custom_call.1} parent=1 // pred_region
      %93 = dma.done [#allocation7], 512
    $region35: #{tpu_custom_call.1} parent=1 // pred_fallthru
      _
    %94 = vsyncpa [#allocation7], 1
  %95 = vsyncmov [#allocation3]
  %s96 = vpop.sfrf %95
  %p97 = scmp.eq.s32.totalorder %s96, 0
  %p98 = pneg %p97
  %100 = shalt.err (%p98)
  %s101 = scalar_lea.sflag [#allocation3], 1
  %102 = vsyncmov %s101
  %s103 = vpop.sfrf %102
  %p104 = scmp.eq.s32.totalorder %s103, 0
  %p105 = pneg %p104
  %107 = shalt.err (%p105)
  %s108 = scalar_lea.sflag [#allocation3], 2
  %109 = vsyncmov %s108
  %s110 = vpop.sfrf %109
  %p111 = scmp.eq.s32.totalorder %s110, 0
  %p112 = pneg %p111
  %114 = shalt.err (%p112)
  %s115 = scalar_lea.sflag [#allocation3], 3
  %116 = vsyncmov %s115
  %s117 = vpop.sfrf %116
  %p118 = scmp.eq.s32.totalorder %s117, 0
  %p119 = pneg %p118
  %121 = shalt.err (%p119)
  %s122 = scalar_lea.sflag [#allocation3], 4
  %123 = vsyncmov %s122
  %s124 = vpop.sfrf %123
  %p125 = scmp.eq.s32.totalorder %s124, 0
  %p126 = pneg %p125
  %128 = shalt.err (%p126)
  %s129 = scalar_lea.sflag [#allocation3], 5
  %130 = vsyncmov %s129
  %s131 = vpop.sfrf %130
  %p132 = scmp.eq.s32.totalorder %s131, 0
  %p133 = pneg %p132
  %135 = shalt.err (%p133)
  %s136 = scalar_lea.sflag [#allocation3], 6
  %137 = vsyncmov %s136
  %s138 = vpop.sfrf %137
  %p139 = scmp.eq.s32.totalorder %s138, 0
  %p140 = pneg %p139
  %142 = shalt.err (%p140)
  %s143 = scalar_lea.sflag [#allocation3], 7
  %144 = vsyncmov %s143
  %s145 = vpop.sfrf %144
  %p146 = scmp.eq.s32.totalorder %s145, 0
  %p147 = pneg %p146
  %149 = shalt.err (%p147)
  %s150 = scalar_lea.sflag [#allocation3], 8
  %151 = vsyncmov %s150
  %s152 = vpop.sfrf %151
  %p153 = scmp.eq.s32.totalorder %s152, 0
  %p154 = pneg %p153
  %156 = shalt.err (%p154)
  %s157 = scalar_lea.sflag [#allocation3], 9
  %158 = vsyncmov %s157
  %s159 = vpop.sfrf %158
  %p160 = scmp.eq.s32.totalorder %s159, 0
  %p161 = pneg %p160
  %163 = shalt.err (%p161)
  %s164 = scalar_lea.sflag [#allocation3], 10
  %165 = vsyncmov %s164
  %s166 = vpop.sfrf %165
  %p167 = scmp.eq.s32.totalorder %s166, 0
  %p168 = pneg %p167
  %170 = shalt.err (%p168)
  %s171 = scalar_lea.sflag [#allocation3], 11
  %172 = vsyncmov %s171
  %s173 = vpop.sfrf %172
  %p174 = scmp.eq.s32.totalorder %s173, 0
  %p175 = pneg %p174
  %177 = shalt.err (%p175)
  %s178 = scalar_lea.sflag [#allocation3], 12
  %179 = vsyncmov %s178
  %s180 = vpop.sfrf %179
  %p181 = scmp.eq.s32.totalorder %s180, 0
  %p182 = pneg %p181
  %184 = shalt.err (%p182)
  %s185 = scalar_lea.sflag [#allocation3], 13
  %186 = vsyncmov %s185
  %s187 = vpop.sfrf %186
  %p188 = scmp.eq.s32.totalorder %s187, 0
  %p189 = pneg %p188
  %191 = shalt.err (%p189)
  %s192 = scalar_lea.sflag [#allocation3], 14
  %193 = vsyncmov %s192
  %s194 = vpop.sfrf %193
  %p195 = scmp.eq.s32.totalorder %s194, 0
  %p196 = pneg %p195
  %198 = shalt.err (%p196)
  %s199 = scalar_lea.sflag [#allocation3], 15
  %200 = vsyncmov %s199
  %s201 = vpop.sfrf %200
  %p202 = scmp.eq.s32.totalorder %s201, 0
  %p203 = pneg %p202
  %205 = shalt.err (%p203)

</llo_original>
